<compile_context>
chip_gen: v5e
topology: v5e:2x2
jax: 0.10.0
libtpu: 0.0.40
codegen_flags: <defaults>
</compile_context>

<pallas_src>
import functools

import jax
import jax.numpy as jnp
from jax.experimental import pallas as pl
from jax.experimental.pallas import tpu as pltpu


def _round_up(x, m):
    return ((x + m - 1) // m) * m


def _vmem_capacity_bytes():
    try:
        info = pltpu.get_tpu_info()
        cap = int(getattr(info, "vmem_capacity_bytes", 0) or 0)
        if cap > 0:
            return cap
    except Exception:
        pass
    return 64 * 1024 * 1024  # conservative fallback == v7x per-TC VMEM


def _patch_embed_kernel(x_ref, w_ref, b_ref, o_ref):
    # bf16 x bf16 MXU matmul with f32 accumulation, fused bias add, cast on store.
    acc = jnp.dot(x_ref[...], w_ref[...], preferred_element_type=jnp.float32)
    o_ref[...] = (acc + b_ref[...]).astype(o_ref.dtype)


def patch_embed_matmul(x_patches, weight, bias, out_dtype=jnp.bfloat16):
    """x_patches: (M, K), weight: (K, E), bias: (1, E) f32 -> (M, E) out_dtype.

    K and E are assumed pre-padded to multiples of 128 (zero padding is inert in the dot).
    """
    M, K = x_patches.shape
    _, E = weight.shape
    in_bytes = jnp.dtype(x_patches.dtype).itemsize
    out_bytes = jnp.dtype(out_dtype).itemsize

    # ---- generation-aware VMEM budget --------------------------------------
    vmem_cap = _vmem_capacity_bytes()                      # 64 MiB v7x, 128 MiB v5e/v6e
    tile_budget = int(vmem_cap * 0.45)                     # double-buffered tiles
    vmem_limit = int(min(vmem_cap - (12 << 20), vmem_cap * 0.85))

    def tiles_bytes(tm_, te_):
        # double-buffered x/w tiles + f32 bias + output tiles
        return (2 * tm_ * K * in_bytes + 2 * K * te_ * in_bytes
                + 2 * te_ * 4 + 2 * tm_ * te_ * out_bytes)

    # ---- E tile: keep the full weight resident whenever it fits; otherwise the
    # largest 128-multiple divisor of E that fits (no over-padding, no re-streaming).
    tm_floor = min(128, _round_up(M, 8))
    te = 128
    for cand in range(E, 127, -128):
        if E % cand == 0 and tiles_bytes(tm_floor, cand) <= tile_budget:
            te = cand
            break

    # ---- M tile: minimise padded rows subject to the VMEM budget ----------
    if M <= 128:
        tm = _round_up(M, 8)                               # single block == full array
    else:
        cands = [c for c in (512, 384, 256, 128) if tiles_bytes(c, te) <= tile_budget]
        if not cands:
            cands = [128]
        tm = min(cands, key=lambda c: (_round_up(M, c) - M, -c))
        # v7x has 2 TensorCores: prefer >= 2 blocks on the parallel axis when possible.
        if E == te and _round_up(M, tm) // tm == 1:
            cands2 = [c for c in cands if _round_up(M, c) // c >= 2]
            if cands2:
                tm = min(cands2, key=lambda c: (_round_up(M, c) - M, -c))

    # TODO(synk): add a K-tiled path ("arbitrary" grid axis + f32 scratch accumulator)
    # for 3-D/video patchify where C*P*P is large enough that a (tm, K) tile no longer
    # fits VMEM.  Standard ViT K (<= a few thousand) never needs it.

    M_pad = _round_up(M, tm)
    if M_pad != M:
        x_patches = jnp.pad(x_patches, ((0, M_pad - M), (0, 0)))

    n_e, n_m = E // te, M_pad // tm
    grid = (n_e, n_m)                                      # E outer -> weight fetched once

    cost = pl.CostEstimate(
        flops=2 * M_pad * K * E,
        transcendentals=0,
        bytes_accessed=(n_e * M_pad * K * in_bytes         # x (re-streamed once per E tile)
                        + K * E * in_bytes                 # weight, fetched once
                        + E * 4                            # bias
                        + M_pad * E * out_bytes),          # output writeback
    )

    out = pl.pallas_call(
        _patch_embed_kernel,
        out_shape=jax.ShapeDtypeStruct((M_pad, E), out_dtype),
        grid_spec=pltpu.PrefetchScalarGridSpec(
            num_scalar_prefetch=0,
            grid=grid,
            in_specs=[
                pl.BlockSpec((tm, K), lambda j, i: (i, 0)),
                pl.BlockSpec((K, te), lambda j, i: (0, j)),
                pl.BlockSpec((1, te), lambda j, i: (0, j)),
            ],
            out_specs=pl.BlockSpec((tm, te), lambda j, i: (i, j)),
        ),
        compiler_params=pltpu.CompilerParams(
            dimension_semantics=("parallel", "parallel"),
            vmem_limit_bytes=vmem_limit,
            # Allow XLA to fuse the NCHW -> (M, K) patch relayout into this kernel's
            # input DMA instead of materialising the patches array in HBM.
            allow_input_fusion=[True, False, False],
        ),
        cost_estimate=cost,
    )(x_patches, weight, bias)

    return out if M_pad == M else out[:M]


def patch_embed(x_nchw, conv_weight, conv_bias, patch_size,
                compute_dtype=jnp.bfloat16, out_dtype=jnp.bfloat16):
    """PatchEmbed.forward: Conv2d(P, stride=P) -> flatten(2) -> transpose(1, 2).

    x_nchw       : (B, C, H, W)
    conv_weight  : (E, C, P, P)   (PyTorch Conv2d weight layout)
    conv_bias    : (E,)
    compute_dtype: dtype fed to the MXU (bf16 by default; accumulation is always f32)
    out_dtype    : result dtype (bf16 by default to halve writeback traffic; pass
                   jnp.float32 for bit-closer parity with the PyTorch f32 module)
    returns      : (B, N, E) with N = (H//P)*(W//P)
    """
    B, C, H, W = x_nchw.shape
    E = conv_weight.shape[0]
    P = patch_size
    Hn, Wn = H // P, W // P
    N = Hn * Wn
    K = C * P * P
    K_pad = _round_up(K, 128)
    E_pad = _round_up(E, 128)

    # Patch extraction -> (M, K) rows.  Under jit, with allow_input_fusion set on the
    # kernel, XLA can fuse this relayout into the kernel's input DMA.
    xb = x_nchw.astype(compute_dtype)
    patches = xb.reshape(B, C, Hn, P, Wn, P)
    patches = patches.transpose(0, 2, 4, 1, 3, 5)          # (B, Hn, Wn, C, P, P)
    patches = patches.reshape(B * N, K)
    if K_pad != K:
        patches = jnp.pad(patches, ((0, 0), (0, K_pad - K)))

    # Conv weight (E, C, P, P) -> (K, E), zero-padded to (K_pad, E_pad); bias in f32.
    w = conv_weight.reshape(E, K).T.astype(compute_dtype)
    w = jnp.pad(w, ((0, K_pad - K), (0, E_pad - E)))
    b = jnp.pad(conv_bias.astype(jnp.float32), (0, E_pad - E)).reshape(1, E_pad)

    out = patch_embed_matmul(patches, w, b, out_dtype=out_dtype)   # (M, E_pad)
    if E_pad != E:
        out = out[:, :E]
    # Row order is (b, hn, wn) == conv's flatten(2) order after transpose(1, 2).
    return out.reshape(B, N, E)


if __name__ == "__main__":
    # Small shapes consistent with the module: B=2, C=4, H=W=16, P=8, E=32.
    B, C, H, W = 2, 4, 16, 16
    P = 8
    E = 32

    key = jax.random.PRNGKey(0)
    kx, kw, kb = jax.random.split(key, 3)

    x = jax.random.normal(kx, (B, C, H, W), dtype=jnp.float32)
    # Deterministic parameters (synthetic; mimic Conv2d parameter shapes).
    conv_weight = jax.random.normal(kw, (E, C, P, P), dtype=jnp.float32) * 0.02
    conv_bias = jax.random.normal(kb, (E,), dtype=jnp.float32) * 0.02

    pe = jax.jit(functools.partial(patch_embed, patch_size=P))
    out = jax.block_until_ready(pe(x, conv_weight, conv_bias))

    # Cross-check against plain-JAX reference (strided conv == patch matmul).
    ref = jax.lax.conv_general_dilated(
        x, conv_weight, window_strides=(P, P), padding="VALID",
        dimension_numbers=("NCHW", "OIHW", "NCHW"),
    ) + conv_bias.reshape(1, E, 1, 1)
    ref = ref.reshape(B, E, -1).transpose(0, 2, 1)

    assert out.shape == (B, (H // P) * (W // P), E)
    # bf16 inputs/outputs with f32 accumulation -> looser tolerance than pure f32.
    assert jnp.allclose(out.astype(jnp.float32), ref, atol=2e-2, rtol=2e-2)

    print("KERNEL_OK")
</pallas_src>

<mosaic_0001>
module attributes {stable_mosaic.version = 11 : i64} {
  func.func @_patch_embed_kernel(%arg0: i32, %arg1: i32, %arg2: memref<8x256xbf16, #tpu.memory_space<vmem>>, %arg3: memref<256x128xbf16, #tpu.memory_space<vmem>>, %arg4: memref<1x128xf32, #tpu.memory_space<vmem>>, %arg5: memref<8x128xbf16, #tpu.memory_space<vmem>>) attributes {dimension_semantics = [#tpu.dimension_semantics<parallel>, #tpu.dimension_semantics<parallel>], iteration_bounds = array<i64: 1, 1>, scalar_prefetch = 0 : i64, scratch_operands = 0 : i64, tpu.core_type = #tpu.core_type<tc>, window_params = [{transform_indices = @transform_0, window_bounds = array<i64: 8, 256>}, {transform_indices = @transform_1, window_bounds = array<i64: 256, 128>}, {transform_indices = @transform_2, window_bounds = array<i64: 1, 128>}, {transform_indices = @transform_3, window_bounds = array<i64: 8, 128>}]} {
    %c0 = arith.constant 0 : index
    %c0_0 = arith.constant 0 : index
    %0 = vector.load %arg2[%c0, %c0_0] : memref<8x256xbf16, #tpu.memory_space<vmem>>, vector<8x256xbf16>
    %c0_1 = arith.constant 0 : index
    %c0_2 = arith.constant 0 : index
    %1 = vector.load %arg3[%c0_1, %c0_2] : memref<256x128xbf16, #tpu.memory_space<vmem>>, vector<256x128xbf16>
    %cst = arith.constant dense<0.000000e+00> : vector<8x128xf32>
    %2 = tpu.matmul %0, %1, %cst {dimension_numbers = #tpu.dot_dimension_numbers<[1], [0], [0], [1], [0, 0, 1, 1], [], []>} : vector<8x256xbf16>, vector<256x128xbf16>, vector<8x128xf32> -> vector<8x128xf32>
    %c0_3 = arith.constant 0 : index
    %c0_4 = arith.constant 0 : index
    %3 = vector.load %arg4[%c0_3, %c0_4] : memref<1x128xf32, #tpu.memory_space<vmem>>, vector<1x128xf32>
    %4 = vector.broadcast %3 : vector<1x128xf32> to vector<8x128xf32>
    %5 = arith.addf %2, %4 : vector<8x128xf32>
    %6 = arith.truncf %5 : vector<8x128xf32> to vector<8x128xbf16>
    %c0_5 = arith.constant 0 : index
    %c0_6 = arith.constant 0 : index
    %7 = vector.load %arg5[%c0_5, %c0_6] : memref<8x128xbf16, #tpu.memory_space<vmem>>, vector<8x128xbf16>
    tpu.vector_store %arg5[%c0_5, %c0_6], %6 {strides = array<i32>} : memref<8x128xbf16, #tpu.memory_space<vmem>>, vector<8x128xbf16>,
    return
  }
  func.func @transform_0(%arg0: i32, %arg1: i32) -> (i32, i32) {
    %c0_i32 = arith.constant 0 : i32
    %c0_i32_0 = arith.constant 0 : i32
    return %arg1, %c0_i32 : i32, i32
  }
  func.func @transform_1(%arg0: i32, %arg1: i32) -> (i32, i32) {
    %c0_i32 = arith.constant 0 : i32
    %c0_i32_0 = arith.constant 0 : i32
    return %c0_i32, %arg0 : i32, i32
  }
  func.func @transform_2(%arg0: i32, %arg1: i32) -> (i32, i32) {
    %c0_i32 = arith.constant 0 : i32
    %c0_i32_0 = arith.constant 0 : i32
    return %c0_i32, %arg0 : i32, i32
  }
  func.func @transform_3(%arg0: i32, %arg1: i32) -> (i32, i32) {
    %c0_i32 = arith.constant 0 : i32
    return %arg1, %arg0 : i32, i32
  }
}

</mosaic_0001>

<llo_original>
// kernel: patch_embed.1
$region0: #{patch_embed.1}
  #allocation0 [shape = 'u32[]', space=smem, size = 0x4, offset = 0x4, fixed_abs, tag = 'smem constant byte address 0x4 - core index']
  #allocation1 [shape = 'u32[72,128]{1,0:T(1,128)}', space=vmem, size = 0x9000, scoped, tag = 'internal scratch']
  %s0 = inlined_call_operand.vmem [shape: bf16[8,256], index: 0, kind: input, shape index: {}]
  %s1 = inlined_call_operand.vmem [shape: bf16[256,128], index: 1, kind: input, shape index: {}]
  %s2 = inlined_call_operand.vmem [shape: f32[1,128], index: 2, kind: input, shape index: {}]
  %s3 = inlined_call_operand.hbm [shape: bf16[8,128], index: 3, kind: output, shape index: {}]
  %s4 = sld [smem:[#allocation0]]
  $region22: #{patch_embed.1} parent=0
    _
  %s6 = ssub.s32 1, %s4
  %s7 = scalar_select 0, %s6, %s4
  $region1: #{patch_embed.1} parent=0
    #allocation2 [shape = 'u8[2048]{0}', space=vmem, size = 0x800, scoped, tag = 'output window, operand 0, single buffered']
    #allocation3 [shape = 's32[1]{0}', space=sflag, size = 0x4, scoped, tag = 'scoped memory for patch_embed.1']
    %8 = vsyncpa [#allocation3], 0
    // Predicated region
    $region2: #{patch_embed.1} parent=1 // pred_check
      _
    $region3: #{patch_embed.1} parent=1 // pred_check_branch
      %10 = sbr.rel (0) target = $region5
    $region4: #{patch_embed.1} parent=1 // pred_region
      _
    $region5: #{patch_embed.1} parent=1 // pred_fallthru
      _
    // Predicated region
    $region6: #{patch_embed.1} parent=1 // pred_check
      _
    $region7: #{patch_embed.1} parent=1 // pred_check_branch
      %12 = sbr.rel (0) target = $region9
    $region8: #{patch_embed.1} parent=1 // pred_region
      _
    $region9: #{patch_embed.1} parent=1 // pred_fallthru
      _
    // Predicated region
    $region10: #{patch_embed.1} parent=1 // pred_check
      _
    $region11: #{patch_embed.1} parent=1 // pred_check_branch
      %14 = sbr.rel (0) target = $region13
    $region12: #{patch_embed.1} parent=1 // pred_region
      _
    $region13: #{patch_embed.1} parent=1 // pred_fallthru
      _
    %v15 = vld [vmem:[%s0] sm:$0xff]
    %v16 = vld [vmem:[%s1] sm:$0xf]
    %v17 = vld [vmem:[%s1 + $0x4] sm:$0xf]
    %v18 = vld [vmem:[%s1 + $0x8] sm:$0xf]
    %v19 = vld [vmem:[%s1 + $0xc] sm:$0xf]
    %v20 = vld [vmem:[%s1 + $0x10] sm:$0xf]
    %v21 = vld [vmem:[%s1 + $0x14] sm:$0xf]
    %v22 = vld [vmem:[%s1 + $0x18] sm:$0xf]
    %v23 = vld [vmem:[%s1 + $0x1c] sm:$0xf]
    %v24 = vld [vmem:[%s1 + $0x20] sm:$0xf]
    %v25 = vld [vmem:[%s1 + $0x24] sm:$0xf]
    %v26 = vld [vmem:[%s1 + $0x28] sm:$0xf]
    %v27 = vld [vmem:[%s1 + $0x2c] sm:$0xf]
    %v28 = vld [vmem:[%s1 + $0x30] sm:$0xf]
    %v29 = vld [vmem:[%s1 + $0x34] sm:$0xf]
    %v30 = vld [vmem:[%s1 + $0x38] sm:$0xf]
    %v31 = vld [vmem:[%s1 + $0x3c] sm:$0xf]
    %v32 = vld [vmem:[%s1 + $0x40] sm:$0xf]
    %v33 = vld [vmem:[%s1 + $0x44] sm:$0xf]
    %v34 = vld [vmem:[%s1 + $0x48] sm:$0xf]
    %v35 = vld [vmem:[%s1 + $0x4c] sm:$0xf]
    %v36 = vld [vmem:[%s1 + $0x50] sm:$0xf]
    %v37 = vld [vmem:[%s1 + $0x54] sm:$0xf]
    %v38 = vld [vmem:[%s1 + $0x58] sm:$0xf]
    %v39 = vld [vmem:[%s1 + $0x5c] sm:$0xf]
    %v40 = vld [vmem:[%s1 + $0x60] sm:$0xf]
    %v41 = vld [vmem:[%s1 + $0x64] sm:$0xf]
    %v42 = vld [vmem:[%s1 + $0x68] sm:$0xf]
    %v43 = vld [vmem:[%s1 + $0x6c] sm:$0xf]
    %v44 = vld [vmem:[%s1 + $0x70] sm:$0xf]
    %v45 = vld [vmem:[%s1 + $0x74] sm:$0xf]
    %v46 = vld [vmem:[%s1 + $0x78] sm:$0xf]
    %v47 = vld [vmem:[%s1 + $0x7c] sm:$0xf]
    %v48 = vld [vmem:[%s2] sm:$0x1]
    %v50 = vperm.slane %v48, 0
    %v53 = vunpack.c.l.b16 %v15
    %v54 = vunpack.c.h.b16 %v15
    %v55 = vpack.c.b16 %v53, %v53
    %v56 = vpack.c.b16 %v54, %v54
    %v91 = vunpack.c.l.b16 %v16
    %v92 = vunpack.c.l.b16 %v17
    %v93 = vunpack.c.l.b16 %v18
    %v94 = vunpack.c.l.b16 %v19
    %v95 = vunpack.c.l.b16 %v20
    %v96 = vunpack.c.l.b16 %v21
    %v97 = vunpack.c.l.b16 %v22
    %v98 = vunpack.c.l.b16 %v23
    %v99 = vunpack.c.l.b16 %v24
    %v100 = vunpack.c.l.b16 %v25
    %v101 = vunpack.c.l.b16 %v26
    %v102 = vunpack.c.l.b16 %v27
    %v103 = vunpack.c.l.b16 %v28
    %v104 = vunpack.c.l.b16 %v29
    %v105 = vunpack.c.l.b16 %v30
    %v106 = vunpack.c.l.b16 %v31
    %v107 = vunpack.c.l.b16 %v32
    %v108 = vunpack.c.l.b16 %v33
    %v109 = vunpack.c.l.b16 %v34
    %v110 = vunpack.c.l.b16 %v35
    %v111 = vunpack.c.l.b16 %v36
    %v112 = vunpack.c.l.b16 %v37
    %v113 = vunpack.c.l.b16 %v38
    %v114 = vunpack.c.l.b16 %v39
    %v115 = vunpack.c.l.b16 %v40
    %v116 = vunpack.c.l.b16 %v41
    %v117 = vunpack.c.l.b16 %v42
    %v118 = vunpack.c.l.b16 %v43
    %v119 = vunpack.c.l.b16 %v44
    %v120 = vunpack.c.l.b16 %v45
    %v121 = vunpack.c.l.b16 %v46
    %v122 = vunpack.c.l.b16 %v47
    %v123 = vpack.c.b16 %v92, %v91
    %v124 = vpack.c.b16 %v94, %v93
    %v125 = vpack.c.b16 %v96, %v95
    %v126 = vpack.c.b16 %v98, %v97
    %v127 = vpack.c.b16 %v100, %v99
    %v128 = vpack.c.b16 %v102, %v101
    %v129 = vpack.c.b16 %v104, %v103
    %v130 = vpack.c.b16 %v106, %v105
    %v131 = vpack.c.b16 %v108, %v107
    %v132 = vpack.c.b16 %v110, %v109
    %v133 = vpack.c.b16 %v112, %v111
    %v134 = vpack.c.b16 %v114, %v113
    %v135 = vpack.c.b16 %v116, %v115
    %v136 = vpack.c.b16 %v118, %v117
    %v137 = vpack.c.b16 %v120, %v119
    %v138 = vpack.c.b16 %v122, %v121
    %155 = vmatpush.bf16.msra.mxu0 %v130
    %156 = vmatpush.bf16.msra.mxu0 %v129
    %157 = vmatpush.bf16.msra.mxu0 %v128
    %158 = vmatpush.bf16.msra.mxu0 %v127
    %159 = vmatpush.bf16.msra.mxu0 %v126
    %160 = vmatpush.bf16.msra.mxu0 %v125
    %161 = vmatpush.bf16.msra.mxu0 %v124
    %162 = vmatpush.bf16.msra.mxu0 %v123
    %163 = vmatmul.bf16.gmra.mxu0 %v55
    %v164 = vpop.f32.mrf.mxu0
    %v165 = vadd.f32 %v50, %v164
    %v166 = vpop.f32.mrf.mxu0
    %167 = vdwg.mxu0
    %168 = vmatpush.bf16.msra.mxu0 %v138
    %169 = vmatpush.bf16.msra.mxu0 %v137
    %170 = vmatpush.bf16.msra.mxu0 %v136
    %171 = vmatpush.bf16.msra.mxu0 %v135
    %172 = vmatpush.bf16.msra.mxu0 %v134
    %173 = vmatpush.bf16.msra.mxu0 %v133
    %174 = vmatpush.bf16.msra.mxu0 %v132
    %175 = vmatpush.bf16.msra.mxu0 %v131
    %176 = vmatmul.bf16.gmra.mxu0 %v56
    %v177 = vpop.f32.mrf.mxu0
    %v178 = vadd.f32 %v165, %v177
    %v179 = vpop.f32.mrf.mxu0
    %180 = vdwg.mxu0
    %v181 = vpack.c.bf16 %v178, %v178
    %182 = vst [vmem:[#allocation2] sm:$0xf] %v181
    // Predicated region
    $region14: #{patch_embed.1} parent=1 // pred_check
      _
    $region15: #{patch_embed.1} parent=1 // pred_check_branch
      %184 = sbr.rel (0) target = $region17
    $region16: #{patch_embed.1} parent=1 // pred_region
      %186 = vsyncadd [#allocation3], 0
      %s188 = sshll.u32 [#allocation2], 4
      %s189 = int_to_ptr.vmem [resolvable:$true] %s188
      %s190 = sshll.u32 %s3, 4
      %s191 = int_to_ptr.hbm [resolvable:$true] %s190
      %193 = dma.vmem_to_hbm [thread:$0]  %s189, 64, %s191, [#allocation3]
    $region17: #{patch_embed.1} parent=1 // pred_fallthru
      _
    // Predicated region
    $region18: #{patch_embed.1} parent=1 // pred_check
      _
    $region19: #{patch_embed.1} parent=1 // pred_check_branch
      %195 = sbr.rel (0) target = $region21
    $region20: #{patch_embed.1} parent=1 // pred_region
      %197 = dma.done [#allocation3], 64
    $region21: #{patch_embed.1} parent=1 // pred_fallthru
      _
    %198 = vsyncpa [#allocation3], 1

</llo_original>
